<compile_context>
chip_gen: v5e
topology: v5e:2x2
jax: 0.10.0
libtpu: 0.0.40
codegen_flags: <defaults>
</compile_context>

<pallas_src>
import math
import functools

import jax
import jax.numpy as jnp
from jax.experimental import pallas as pl
from jax.experimental.pallas import tpu as pltpu


_MASK_VALUE = -1e30  # large finite negative: robust for masked scores


def _qkv_proj_kernel(x_ref, w_ref, b_ref, q_ref, k_ref, v_ref, *, n_head, head_dim):
    # x_ref: (1, tm, C); w_ref: (H, C, 3*hd) resident; b_ref: (H, 1, 3*hd) resident
    # q/k/v_ref: (1, H, tm, hd)
    x = x_ref[0]
    hd = head_dim
    for h in range(n_head):
        y = jnp.dot(x, w_ref[h], preferred_element_type=jnp.float32)  # (tm, 3*hd)
        y = y + b_ref[h].astype(jnp.float32)
        q_ref[0, h] = y[:, 0 * hd:1 * hd].astype(q_ref.dtype)
        k_ref[0, h] = y[:, 1 * hd:2 * hd].astype(k_ref.dtype)
        v_ref[0, h] = y[:, 2 * hd:3 * hd].astype(v_ref.dtype)


def _flash_attn_kernel(q_ref, k_ref, v_ref, o_ref, *, tq, tk):
    # q_ref: (1,1,tq,hd); k_ref/v_ref: (1,1,T,hd) resident per (b,h); o_ref: (1,1,tq,hd)
    qi = pl.program_id(2)
    q = q_ref[0, 0]                  # sm_scale already folded into q-proj weights
    hd = q.shape[-1]

    def tile_step(ki, m, l, acc, masked):
        start = pl.multiple_of(ki * tk, tk)
        k = k_ref[0, 0, pl.ds(start, tk), :]
        v = v_ref[0, 0, pl.ds(start, tk), :]
        # Contract last dims directly: no materialized k transpose.
        s = jax.lax.dot_general(q, k, (((1,), (1,)), ((), ())),
                                preferred_element_type=jnp.float32)   # (tq, tk)
        if masked:  # only the diagonal tile pays for the iota mask
            r = jax.lax.broadcasted_iota(jnp.int32, (tq, tk), 0)
            c = jax.lax.broadcasted_iota(jnp.int32, (tq, tk), 1)
            s = jnp.where(r >= c, s, _MASK_VALUE)
        m_new = jnp.maximum(m, jnp.max(s, axis=-1, keepdims=True))
        alpha = jnp.exp(m - m_new)
        p = jnp.exp(s - m_new)
        l_new = alpha * l + jnp.sum(p, axis=-1, keepdims=True)
        acc_new = alpha * acc + jnp.dot(p.astype(v.dtype), v,
                                        preferred_element_type=jnp.float32)
        return m_new, l_new, acc_new

    m = jnp.full((tq, 1), -jnp.inf, jnp.float32)
    l = jnp.zeros((tq, 1), jnp.float32)
    acc = jnp.zeros((tq, hd), jnp.float32)

    # Strictly-below-diagonal kv tiles: fully unmasked (tq == tk, aligned).
    def body(ki, carry):
        return tile_step(ki, *carry, masked=False)

    m, l, acc = jax.lax.fori_loop(0, qi, body, (m, l, acc))
    # Diagonal tile (always present; every row sees >= 1 unmasked column).
    m, l, acc = tile_step(qi, m, l, acc, masked=True)

    inv_l = pl.reciprocal(l, approx=True)  # EUP slot, VALU stays free
    o_ref[0, 0] = (acc * inv_l).astype(o_ref.dtype)


def _out_proj_kernel(y_ref, w_ref, b_ref, o_ref, *, n_head):
    # y_ref: (1, H, tm, hd); w_ref: (H, hd, C) resident; b_ref: (1, C); o_ref: (1, tm, C)
    tm, C = o_ref.shape[1], o_ref.shape[2]
    acc = jnp.zeros((tm, C), jnp.float32)
    for h in range(n_head):
        acc = acc + jnp.dot(y_ref[0, h], w_ref[h],
                            preferred_element_type=jnp.float32)
    o_ref[0] = (acc + b_ref[...].astype(jnp.float32)).astype(o_ref.dtype)


def causal_self_attention(x, w_attn, b_attn, w_proj, b_proj, *, n_head,
                          block_q=256, block_k=256, block_m=256):
    """x: (B, T, C); w_attn: (C, 3C); b_attn: (3C,); w_proj: (C, C); b_proj: (C,)."""
    B, T, C = x.shape
    H = n_head
    assert C % H == 0
    hd = C // H
    tq = min(block_q, T)
    tk = min(block_k, T)
    tm = min(block_m, T)
    assert T % tq == 0 and T % tk == 0 and T % tm == 0
    assert tq == tk, "in-kernel causal loop assumes square, aligned q/kv tiles"
    sm_scale = 1.0 / math.sqrt(hd)

    # Fold the attention scale into the q projection (free, one-time host work).
    w_attn = jnp.concatenate([w_attn[:, :C] * sm_scale, w_attn[:, C:]], axis=1)
    b_attn = jnp.concatenate([b_attn[:C] * sm_scale, b_attn[C:]])

    # One-time, host-side relayout into head-major, q|k|v-contiguous blocks.
    w_qkv = w_attn.reshape(C, 3, H, hd).transpose(2, 0, 1, 3).reshape(H, C, 3 * hd)
    b_qkv = b_attn.reshape(3, H, hd).transpose(1, 0, 2).reshape(H, 1, 3 * hd)
    w_out = w_proj.reshape(H, hd, C)                              # (H, hd, C)
    b_out = b_proj.reshape(1, C)                                  # (1, C)

    def _cparams(sem):
        # No explicit vmem_limit_bytes: block + scratch footprints stay well
        # under the default scoped limit on v5e/v6e/v7x (never request 64 MiB,
        # which is all of a v7x TensorCore's physical VMEM).
        return pltpu.CompilerParams(dimension_semantics=sem)

    # 1) QKV projection straight into head-major (B, H, T, hd); weights resident.
    q, k, v = pl.pallas_call(
        functools.partial(_qkv_proj_kernel, n_head=H, head_dim=hd),
        out_shape=(jax.ShapeDtypeStruct((B, H, T, hd), x.dtype),) * 3,
        grid=(B, T // tm),
        in_specs=[
            pl.BlockSpec((1, tm, C), lambda b, ti: (b, ti, 0)),
            pl.BlockSpec((H, C, 3 * hd), lambda b, ti: (0, 0, 0)),   # resident
            pl.BlockSpec((H, 1, 3 * hd), lambda b, ti: (0, 0, 0)),   # resident
        ],
        out_specs=(pl.BlockSpec((1, H, tm, hd), lambda b, ti: (b, 0, ti, 0)),) * 3,
        compiler_params=_cparams(("parallel", "parallel")),
    )(x, w_qkv, b_qkv)

    # 2) Flash attention: kv loop inside the kernel over lower-triangular tiles
    #    only; K/V for each (b, h) are DMA'd once and reused across all q tiles.
    nq = T // tq
    y = pl.pallas_call(
        functools.partial(_flash_attn_kernel, tq=tq, tk=tk),
        out_shape=jax.ShapeDtypeStruct((B, H, T, hd), x.dtype),
        grid=(B, H, nq),
        in_specs=[
            pl.BlockSpec((1, 1, tq, hd), lambda b, h, qi: (b, h, qi, 0)),
            pl.BlockSpec((1, 1, T, hd), lambda b, h, qi: (b, h, 0, 0)),
            pl.BlockSpec((1, 1, T, hd), lambda b, h, qi: (b, h, 0, 0)),
        ],
        out_specs=pl.BlockSpec((1, 1, tq, hd), lambda b, h, qi: (b, h, qi, 0)),
        compiler_params=_cparams(("parallel", "parallel", "parallel")),
    )(q, k, v)

    # 3) Output projection + head merge, c_proj weight resident; heads are
    #    accumulated in-kernel into an f32 value -> lane-dense (tm, C) output.
    out = pl.pallas_call(
        functools.partial(_out_proj_kernel, n_head=H),
        out_shape=jax.ShapeDtypeStruct((B, T, C), x.dtype),
        grid=(B, T // tm),
        in_specs=[
            pl.BlockSpec((1, H, tm, hd), lambda b, ti: (b, 0, ti, 0)),
            pl.BlockSpec((H, hd, C), lambda b, ti: (0, 0, 0)),       # resident
            pl.BlockSpec((1, C), lambda b, ti: (0, 0)),
        ],
        out_specs=pl.BlockSpec((1, tm, C), lambda b, ti: (b, ti, 0)),
        compiler_params=_cparams(("parallel", "parallel")),
    )(y, w_out, b_out)

    return out


def _reference(x, w_attn, b_attn, w_proj, b_proj, n_head):
    """Pure-JAX mirror of the PyTorch forward (eval mode)."""
    B, T, C = x.shape
    hd = C // n_head
    qkv = x @ w_attn + b_attn                              # (B, T, 3C)
    q, k, v = jnp.split(qkv, 3, axis=-1)
    def heads(t):  # (B, T, C) -> (B, H, T, hd)
        return t.reshape(B, T, n_head, hd).transpose(0, 2, 1, 3)
    q, k, v = heads(q), heads(k), heads(v)
    att = (q @ jnp.swapaxes(k, -2, -1)) * (1.0 / math.sqrt(hd))
    mask = jnp.tril(jnp.ones((T, T), bool))
    att = jnp.where(mask, att, -jnp.inf)
    att = jax.nn.softmax(att, axis=-1)
    y = att @ v                                            # (B, H, T, hd)
    y = y.transpose(0, 2, 1, 3).reshape(B, T, C)
    return y @ w_proj + b_proj


if __name__ == "__main__":
    # Small GPT-ish config: B=2, T=8, n_embd=32, n_head=4, bias=True, dropout=0
    B, T, C, N_HEAD = 2, 8, 32, 4

    key = jax.random.PRNGKey(0)
    kx, k1, k2, k3, k4 = jax.random.split(key, 5)
    x = jax.random.normal(kx, (B, T, C), jnp.float32)
    # nn.Linear(C, 3C): torch weight is (3C, C); we pass the (C, 3C) transpose.
    w_attn = jax.random.normal(k1, (C, 3 * C), jnp.float32) * 0.02
    b_attn = jax.random.normal(k2, (3 * C,), jnp.float32) * 0.02
    w_proj = jax.random.normal(k3, (C, C), jnp.float32) * 0.02
    b_proj = jax.random.normal(k4, (C,), jnp.float32) * 0.02

    y = causal_self_attention(x, w_attn, b_attn, w_proj, b_proj, n_head=N_HEAD)
    y = jax.block_until_ready(y)

    y_ref = _reference(x, w_attn, b_attn, w_proj, b_proj, N_HEAD)
    # Tolerance covers the EUP approximate reciprocal in the softmax finalize.
    assert jnp.allclose(y, y_ref, atol=1e-3, rtol=1e-3), "mismatch vs reference"

    print("KERNEL_OK")
</pallas_src>

<mosaic_0001>
module attributes {stable_mosaic.version = 11 : i64} {
  func.func @_qkv_proj_kernel(%arg0: i32, %arg1: i32, %arg2: memref<1x8x32xf32, #tpu.memory_space<vmem>>, %arg3: memref<4x32x24xf32, #tpu.memory_space<vmem>>, %arg4: memref<4x1x24xf32, #tpu.memory_space<vmem>>, %arg5: memref<1x4x8x8xf32, #tpu.memory_space<vmem>>, %arg6: memref<1x4x8x8xf32, #tpu.memory_space<vmem>>, %arg7: memref<1x4x8x8xf32, #tpu.memory_space<vmem>>) attributes {dimension_semantics = [#tpu.dimension_semantics<parallel>, #tpu.dimension_semantics<parallel>], iteration_bounds = array<i64: 2, 1>, scalar_prefetch = 0 : i64, scratch_operands = 0 : i64, tpu.core_type = #tpu.core_type<tc>, window_params = [{transform_indices = @transform_0, window_bounds = array<i64: 1, 8, 32>}, {pipeline_mode = #tpu.pipeline_mode<synchronous>, transform_indices = @transform_1, window_bounds = array<i64: 4, 32, 24>}, {pipeline_mode = #tpu.pipeline_mode<synchronous>, transform_indices = @transform_2, window_bounds = array<i64: 4, 1, 24>}, {transform_indices = @transform_3, window_bounds = array<i64: 1, 4, 8, 8>}, {transform_indices = @transform_4, window_bounds = array<i64: 1, 4, 8, 8>}, {transform_indices = @transform_5, window_bounds = array<i64: 1, 4, 8, 8>}]} {
    %c0 = arith.constant 0 : index
    %c0_0 = arith.constant 0 : index
    %c0_1 = arith.constant 0 : index
    %0 = vector.load %arg2[%c0, %c0_0, %c0_1] : memref<1x8x32xf32, #tpu.memory_space<vmem>>, vector<1x8x32xf32>
    %1 = vector.shape_cast %0 : vector<1x8x32xf32> to vector<8x32xf32>
    %c0_2 = arith.constant 0 : index
    %c0_3 = arith.constant 0 : index
    %c0_4 = arith.constant 0 : index
    %2 = vector.load %arg3[%c0_2, %c0_3, %c0_4] : memref<4x32x24xf32, #tpu.memory_space<vmem>>, vector<1x32x24xf32>
    %3 = vector.shape_cast %2 : vector<1x32x24xf32> to vector<32x24xf32>
    %cst = arith.constant dense<0.000000e+00> : vector<8x24xf32>
    %4 = tpu.matmul %1, %3, %cst {dimension_numbers = #tpu.dot_dimension_numbers<[1], [0], [0], [1], [0, 0, 1, 1], [], []>} : vector<8x32xf32>, vector<32x24xf32>, vector<8x24xf32> -> vector<8x24xf32>
    %c0_5 = arith.constant 0 : index
    %c0_6 = arith.constant 0 : index
    %c0_7 = arith.constant 0 : index
    %5 = vector.load %arg4[%c0_5, %c0_6, %c0_7] : memref<4x1x24xf32, #tpu.memory_space<vmem>>, vector<1x1x24xf32>
    %6 = vector.shape_cast %5 : vector<1x1x24xf32> to vector<1x24xf32>
    %7 = vector.broadcast %6 : vector<1x24xf32> to vector<8x24xf32>
    %8 = arith.addf %4, %7 : vector<8x24xf32>
    %9 = vector.extract_strided_slice %8 {offsets = [0, 0], sizes = [8, 8], strides = [1, 1]} : vector<8x24xf32> to vector<8x8xf32>
    %c0_8 = arith.constant 0 : index
    %c0_9 = arith.constant 0 : index
    %c0_10 = arith.constant 0 : index
    %c0_11 = arith.constant 0 : index
    %10 = vector.load %arg5[%c0_8, %c0_9, %c0_10, %c0_11] : memref<1x4x8x8xf32, #tpu.memory_space<vmem>>, vector<1x1x8x8xf32>
    %11 = vector.shape_cast %10 : vector<1x1x8x8xf32> to vector<8x8xf32>
    %12 = vector.shape_cast %9 : vector<8x8xf32> to vector<1x1x8x8xf32>
    tpu.vector_store %arg5[%c0_8, %c0_9, %c0_10, %c0_11], %12 {strides = array<i32>} : memref<1x4x8x8xf32, #tpu.memory_space<vmem>>, vector<1x1x8x8xf32>,
    %13 = vector.extract_strided_slice %8 {offsets = [0, 8], sizes = [8, 8], strides = [1, 1]} : vector<8x24xf32> to vector<8x8xf32>
    %c0_12 = arith.constant 0 : index
    %c0_13 = arith.constant 0 : index
    %c0_14 = arith.constant 0 : index
    %c0_15 = arith.constant 0 : index
    %14 = vector.load %arg6[%c0_12, %c0_13, %c0_14, %c0_15] : memref<1x4x8x8xf32, #tpu.memory_space<vmem>>, vector<1x1x8x8xf32>
    %15 = vector.shape_cast %14 : vector<1x1x8x8xf32> to vector<8x8xf32>
    %16 = vector.shape_cast %13 : vector<8x8xf32> to vector<1x1x8x8xf32>
    tpu.vector_store %arg6[%c0_12, %c0_13, %c0_14, %c0_15], %16 {strides = array<i32>} : memref<1x4x8x8xf32, #tpu.memory_space<vmem>>, vector<1x1x8x8xf32>,
    %17 = vector.extract_strided_slice %8 {offsets = [0, 16], sizes = [8, 8], strides = [1, 1]} : vector<8x24xf32> to vector<8x8xf32>
    %c0_16 = arith.constant 0 : index
    %c0_17 = arith.constant 0 : index
    %c0_18 = arith.constant 0 : index
    %c0_19 = arith.constant 0 : index
    %18 = vector.load %arg7[%c0_16, %c0_17, %c0_18, %c0_19] : memref<1x4x8x8xf32, #tpu.memory_space<vmem>>, vector<1x1x8x8xf32>
    %19 = vector.shape_cast %18 : vector<1x1x8x8xf32> to vector<8x8xf32>
    %20 = vector.shape_cast %17 : vector<8x8xf32> to vector<1x1x8x8xf32>
    tpu.vector_store %arg7[%c0_16, %c0_17, %c0_18, %c0_19], %20 {strides = array<i32>} : memref<1x4x8x8xf32, #tpu.memory_space<vmem>>, vector<1x1x8x8xf32>,
    %c1 = arith.constant 1 : index
    %c0_20 = arith.constant 0 : index
    %c0_21 = arith.constant 0 : index
    %21 = vector.load %arg3[%c1, %c0_20, %c0_21] : memref<4x32x24xf32, #tpu.memory_space<vmem>>, vector<1x32x24xf32>
    %22 = vector.shape_cast %21 : vector<1x32x24xf32> to vector<32x24xf32>
    %cst_22 = arith.constant dense<0.000000e+00> : vector<8x24xf32>
    %23 = tpu.matmul %1, %22, %cst_22 {dimension_numbers = #tpu.dot_dimension_numbers<[1], [0], [0], [1], [0, 0, 1, 1], [], []>} : vector<8x32xf32>, vector<32x24xf32>, vector<8x24xf32> -> vector<8x24xf32>
    %c1_23 = arith.constant 1 : index
    %c0_24 = arith.constant 0 : index
    %c0_25 = arith.constant 0 : index
    %24 = vector.load %arg4[%c1_23, %c0_24, %c0_25] : memref<4x1x24xf32, #tpu.memory_space<vmem>>, vector<1x1x24xf32>
    %25 = vector.shape_cast %24 : vector<1x1x24xf32> to vector<1x24xf32>
    %26 = vector.broadcast %25 : vector<1x24xf32> to vector<8x24xf32>
    %27 = arith.addf %23, %26 : vector<8x24xf32>
    %28 = vector.extract_strided_slice %27 {offsets = [0, 0], sizes = [8, 8], strides = [1, 1]} : vector<8x24xf32> to vector<8x8xf32>
    %c0_26 = arith.constant 0 : index
    %c1_27 = arith.constant 1 : index
    %c0_28 = arith.constant 0 : index
    %c0_29 = arith.constant 0 : index
    %29 = vector.load %arg5[%c0_26, %c1_27, %c0_28, %c0_29] : memref<1x4x8x8xf32, #tpu.memory_space<vmem>>, vector<1x1x8x8xf32>
    %30 = vector.shape_cast %29 : vector<1x1x8x8xf32> to vector<8x8xf32>
    %31 = vector.shape_cast %28 : vector<8x8xf32> to vector<1x1x8x8xf32>
    tpu.vector_store %arg5[%c0_26, %c1_27, %c0_28, %c0_29], %31 {strides = array<i32>} : memref<1x4x8x8xf32, #tpu.memory_space<vmem>>, vector<1x1x8x8xf32>,
    %32 = vector.extract_strided_slice %27 {offsets = [0, 8], sizes = [8, 8], strides = [1, 1]} : vector<8x24xf32> to vector<8x8xf32>
    %c0_30 = arith.constant 0 : index
    %c1_31 = arith.constant 1 : index
    %c0_32 = arith.constant 0 : index
    %c0_33 = arith.constant 0 : index
    %33 = vector.load %arg6[%c0_30, %c1_31, %c0_32, %c0_33] : memref<1x4x8x8xf32, #tpu.memory_space<vmem>>, vector<1x1x8x8xf32>
    %34 = vector.shape_cast %33 : vector<1x1x8x8xf32> to vector<8x8xf32>
    %35 = vector.shape_cast %32 : vector<8x8xf32> to vector<1x1x8x8xf32>
    tpu.vector_store %arg6[%c0_30, %c1_31, %c0_32, %c0_33], %35 {strides = array<i32>} : memref<1x4x8x8xf32, #tpu.memory_space<vmem>>, vector<1x1x8x8xf32>,
    %36 = vector.extract_strided_slice %27 {offsets = [0, 16], sizes = [8, 8], strides = [1, 1]} : vector<8x24xf32> to vector<8x8xf32>
    %c0_34 = arith.constant 0 : index
    %c1_35 = arith.constant 1 : index
    %c0_36 = arith.constant 0 : index
    %c0_37 = arith.constant 0 : index
    %37 = vector.load %arg7[%c0_34, %c1_35, %c0_36, %c0_37] : memref<1x4x8x8xf32, #tpu.memory_space<vmem>>, vector<1x1x8x8xf32>
    %38 = vector.shape_cast %37 : vector<1x1x8x8xf32> to vector<8x8xf32>
    %39 = vector.shape_cast %36 : vector<8x8xf32> to vector<1x1x8x8xf32>
    tpu.vector_store %arg7[%c0_34, %c1_35, %c0_36, %c0_37], %39 {strides = array<i32>} : memref<1x4x8x8xf32, #tpu.memory_space<vmem>>, vector<1x1x8x8xf32>,
    %c2 = arith.constant 2 : index
    %c0_38 = arith.constant 0 : index
    %c0_39 = arith.constant 0 : index
    %40 = vector.load %arg3[%c2, %c0_38, %c0_39] : memref<4x32x24xf32, #tpu.memory_space<vmem>>, vector<1x32x24xf32>
    %41 = vector.shape_cast %40 : vector<1x32x24xf32> to vector<32x24xf32>
    %cst_40 = arith.constant dense<0.000000e+00> : vector<8x24xf32>
    %42 = tpu.matmul %1, %41, %cst_40 {dimension_numbers = #tpu.dot_dimension_numbers<[1], [0], [0], [1], [0, 0, 1, 1], [], []>} : vector<8x32xf32>, vector<32x24xf32>, vector<8x24xf32> -> vector<8x24xf32>
    %c2_41 = arith.constant 2 : index
    %c0_42 = arith.constant 0 : index
    %c0_43 = arith.constant 0 : index
    %43 = vector.load %arg4[%c2_41, %c0_42, %c0_43] : memref<4x1x24xf32, #tpu.memory_space<vmem>>, vector<1x1x24xf32>
    %44 = vector.shape_cast %43 : vector<1x1x24xf32> to vector<1x24xf32>
    %45 = vector.broadcast %44 : vector<1x24xf32> to vector<8x24xf32>
    %46 = arith.addf %42, %45 : vector<8x24xf32>
    %47 = vector.extract_strided_slice %46 {offsets = [0, 0], sizes = [8, 8], strides = [1, 1]} : vector<8x24xf32> to vector<8x8xf32>
    %c0_44 = arith.constant 0 : index
    %c2_45 = arith.constant 2 : index
    %c0_46 = arith.constant 0 : index
    %c0_47 = arith.constant 0 : index
    %48 = vector.load %arg5[%c0_44, %c2_45, %c0_46, %c0_47] : memref<1x4x8x8xf32, #tpu.memory_space<vmem>>, vector<1x1x8x8xf32>
    %49 = vector.shape_cast %48 : vector<1x1x8x8xf32> to vector<8x8xf32>
    %50 = vector.shape_cast %47 : vector<8x8xf32> to vector<1x1x8x8xf32>
    tpu.vector_store %arg5[%c0_44, %c2_45, %c0_46, %c0_47], %50 {strides = array<i32>} : memref<1x4x8x8xf32, #tpu.memory_space<vmem>>, vector<1x1x8x8xf32>,
    %51 = vector.extract_strided_slice %46 {offsets = [0, 8], sizes = [8, 8], strides = [1, 1]} : vector<8x24xf32> to vector<8x8xf32>
    %c0_48 = arith.constant 0 : index
    %c2_49 = arith.constant 2 : index
    %c0_50 = arith.constant 0 : index
    %c0_51 = arith.constant 0 : index
    %52 = vector.load %arg6[%c0_48, %c2_49, %c0_50, %c0_51] : memref<1x4x8x8xf32, #tpu.memory_space<vmem>>, vector<1x1x8x8xf32>
    %53 = vector.shape_cast %52 : vector<1x1x8x8xf32> to vector<8x8xf32>
    %54 = vector.shape_cast %51 : vector<8x8xf32> to vector<1x1x8x8xf32>
    tpu.vector_store %arg6[%c0_48, %c2_49, %c0_50, %c0_51], %54 {strides = array<i32>} : memref<1x4x8x8xf32, #tpu.memory_space<vmem>>, vector<1x1x8x8xf32>,
    %55 = vector.extract_strided_slice %46 {offsets = [0, 16], sizes = [8, 8], strides = [1, 1]} : vector<8x24xf32> to vector<8x8xf32>
    %c0_52 = arith.constant 0 : index
    %c2_53 = arith.constant 2 : index
    %c0_54 = arith.constant 0 : index
    %c0_55 = arith.constant 0 : index
    %56 = vector.load %arg7[%c0_52, %c2_53, %c0_54, %c0_55] : memref<1x4x8x8xf32, #tpu.memory_space<vmem>>, vector<1x1x8x8xf32>
    %57 = vector.shape_cast %56 : vector<1x1x8x8xf32> to vector<8x8xf32>
    %58 = vector.shape_cast %55 : vector<8x8xf32> to vector<1x1x8x8xf32>
    tpu.vector_store %arg7[%c0_52, %c2_53, %c0_54, %c0_55], %58 {strides = array<i32>} : memref<1x4x8x8xf32, #tpu.memory_space<vmem>>, vector<1x1x8x8xf32>,
    %c3 = arith.constant 3 : index
    %c0_56 = arith.constant 0 : index
    %c0_57 = arith.constant 0 : index
    %59 = vector.load %arg3[%c3, %c0_56, %c0_57] : memref<4x32x24xf32, #tpu.memory_space<vmem>>, vector<1x32x24xf32>
    %60 = vector.shape_cast %59 : vector<1x32x24xf32> to vector<32x24xf32>
    %cst_58 = arith.constant dense<0.000000e+00> : vector<8x24xf32>
    %61 = tpu.matmul %1, %60, %cst_58 {dimension_numbers = #tpu.dot_dimension_numbers<[1], [0], [0], [1], [0, 0, 1, 1], [], []>} : vector<8x32xf32>, vector<32x24xf32>, vector<8x24xf32> -> vector<8x24xf32>
    %c3_59 = arith.constant 3 : index
    %c0_60 = arith.constant 0 : index
    %c0_61 = arith.constant 0 : index
    %62 = vector.load %arg4[%c3_59, %c0_60, %c0_61] : memref<4x1x24xf32, #tpu.memory_space<vmem>>, vector<1x1x24xf32>
    %63 = vector.shape_cast %62 : vector<1x1x24xf32> to vector<1x24xf32>
    %64 = vector.broadcast %63 : vector<1x24xf32> to vector<8x24xf32>
    %65 = arith.addf %61, %64 : vector<8x24xf32>
    %66 = vector.extract_strided_slice %65 {offsets = [0, 0], sizes = [8, 8], strides = [1, 1]} : vector<8x24xf32> to vector<8x8xf32>
    %c0_62 = arith.constant 0 : index
    %c3_63 = arith.constant 3 : index
    %c0_64 = arith.constant 0 : index
    %c0_65 = arith.constant 0 : index
    %67 = vector.load %arg5[%c0_62, %c3_63, %c0_64, %c0_65] : memref<1x4x8x8xf32, #tpu.memory_space<vmem>>, vector<1x1x8x8xf32>
    %68 = vector.shape_cast %67 : vector<1x1x8x8xf32> to vector<8x8xf32>
    %69 = vector.shape_cast %66 : vector<8x8xf32> to vector<1x1x8x8xf32>
    tpu.vector_store %arg5[%c0_62, %c3_63, %c0_64, %c0_65], %69 {strides = array<i32>} : memref<1x4x8x8xf32, #tpu.memory_space<vmem>>, vector<1x1x8x8xf32>,
    %70 = vector.extract_strided_slice %65 {offsets = [0, 8], sizes = [8, 8], strides = [1, 1]} : vector<8x24xf32> to vector<8x8xf32>
    %c0_66 = arith.constant 0 : index
    %c3_67 = arith.constant 3 : index
    %c0_68 = arith.constant 0 : index
    %c0_69 = arith.constant 0 : index
    %71 = vector.load %arg6[%c0_66, %c3_67, %c0_68, %c0_69] : memref<1x4x8x8xf32, #tpu.memory_space<vmem>>, vector<1x1x8x8xf32>
    %72 = vector.shape_cast %71 : vector<1x1x8x8xf32> to vector<8x8xf32>
    %73 = vector.shape_cast %70 : vector<8x8xf32> to vector<1x1x8x8xf32>
    tpu.vector_store %arg6[%c0_66, %c3_67, %c0_68, %c0_69], %73 {strides = array<i32>} : memref<1x4x8x8xf32, #tpu.memory_space<vmem>>, vector<1x1x8x8xf32>,
    %74 = vector.extract_strided_slice %65 {offsets = [0, 16], sizes = [8, 8], strides = [1, 1]} : vector<8x24xf32> to vector<8x8xf32>
    %c0_70 = arith.constant 0 : index
    %c3_71 = arith.constant 3 : index
    %c0_72 = arith.constant 0 : index
    %c0_73 = arith.constant 0 : index
    %75 = vector.load %arg7[%c0_70, %c3_71, %c0_72, %c0_73] : memref<1x4x8x8xf32, #tpu.memory_space<vmem>>, vector<1x1x8x8xf32>
    %76 = vector.shape_cast %75 : vector<1x1x8x8xf32> to vector<8x8xf32>
    %77 = vector.shape_cast %74 : vector<8x8xf32> to vector<1x1x8x8xf32>
    tpu.vector_store %arg7[%c0_70, %c3_71, %c0_72, %c0_73], %77 {strides = array<i32>} : memref<1x4x8x8xf32, #tpu.memory_space<vmem>>, vector<1x1x8x8xf32>,
    return
  }
  func.func @transform_0(%arg0: i32, %arg1: i32) -> (i32, i32, i32) {
    %c0_i32 = arith.constant 0 : i32
    %c0_i32_0 = arith.constant 0 : i32
    return %arg0, %arg1, %c0_i32 : i32, i32, i32
  }
  func.func @transform_1(%arg0: i32, %arg1: i32) -> (i32, i32, i32) {
    %c0_i32 = arith.constant 0 : i32
    %c0_i32_0 = arith.constant 0 : i32
    %c0_i32_1 = arith.constant 0 : i32
    %c0_i32_2 = arith.constant 0 : i32
    return %c0_i32, %c0_i32_0, %c0_i32_1 : i32, i32, i32
  }
  func.func @transform_2(%arg0: i32, %arg1: i32) -> (i32, i32, i32) {
    %c0_i32 = arith.constant 0 : i32
    %c0_i32_0 = arith.constant 0 : i32
    %c0_i32_1 = arith.constant 0 : i32
    %c0_i32_2 = arith.constant 0 : i32
    return %c0_i32, %c0_i32_0, %c0_i32_1 : i32, i32, i32
  }
  func.func @transform_3(%arg0: i32, %arg1: i32) -> (i32, i32, i32, i32) {
    %c0_i32 = arith.constant 0 : i32
    %c0_i32_0 = arith.constant 0 : i32
    %c0_i32_1 = arith.constant 0 : i32
    return %arg0, %c0_i32, %arg1, %c0_i32_0 : i32, i32, i32, i32
  }
  func.func @transform_4(%arg0: i32, %arg1: i32) -> (i32, i32, i32, i32) {
    %c0_i32 = arith.constant 0 : i32
    %c0_i32_0 = arith.constant 0 : i32
    %c0_i32_1 = arith.constant 0 : i32
    return %arg0, %c0_i32, %arg1, %c0_i32_0 : i32, i32, i32, i32
  }
  func.func @transform_5(%arg0: i32, %arg1: i32) -> (i32, i32, i32, i32) {
    %c0_i32 = arith.constant 0 : i32
    %c0_i32_0 = arith.constant 0 : i32
    %c0_i32_1 = arith.constant 0 : i32
    return %arg0, %c0_i32, %arg1, %c0_i32_0 : i32, i32, i32, i32
  }
}

</mosaic_0001>

<llo_original>
// kernel: tpu_custom_call.1
$region0: #{tpu_custom_call.1}
  #allocation0 [shape = 'u32[]', space=smem, size = 0x4, offset = 0x4, fixed_abs, tag = 'smem constant byte address 0x4 - core index']
  #allocation1 [shape = 'u32[72,128]{1,0:T(1,128)}', space=vmem, size = 0x9000, scoped, tag = 'internal scratch']
  %s0 = inlined_call_operand.vmem [shape: f32[2,8,32], index: 0, kind: input, shape index: {}]
  %s1 = inlined_call_operand.vmem [shape: f32[4,32,24], index: 1, kind: input, shape index: {}]
  %s2 = inlined_call_operand.vmem [shape: f32[4,1,24], index: 2, kind: input, shape index: {}]
  %s3 = inlined_call_operand.hbm [shape: f32[2,4,8,8], index: 3, kind: output, shape index: {0}]
  %s4 = inlined_call_operand.hbm [shape: f32[2,4,8,8], index: 4, kind: output, shape index: {1}]
  %s5 = inlined_call_operand.hbm [shape: f32[2,4,8,8], index: 5, kind: output, shape index: {2}]
  %6 = xla_tuple %s3, %s4, %s5
  %s7 = sld [smem:[#allocation0]]
  $region61: #{tpu_custom_call.1} parent=0
    _
  %s9 = ssub.s32 1, %s7
  %s10 = scalar_select 0, %s9, %s7
  $region1: #{tpu_custom_call.1} parent=0
    #allocation2 [shape = 'u8[32768]{0}', space=vmem, size = 0x8000, scoped, tag = 'output window, operand 0']
    #allocation3 [shape = 's32[2]{0}', space=sflag, size = 0x8, scoped, tag = 'scoped memory for tpu_custom_call.1']
    #allocation4 [shape = 'u8[32768]{0}', space=vmem, size = 0x8000, scoped, tag = 'output window, operand 1']
    #allocation5 [shape = 's32[2]{0}', space=sflag, size = 0x8, scoped, tag = 'scoped memory for tpu_custom_call.1']
    #allocation6 [shape = 'u8[32768]{0}', space=vmem, size = 0x8000, scoped, tag = 'output window, operand 2']
    %11 = vsyncpa [#allocation3], 0
    %s12 = scalar_lea.sflag [#allocation3], 1
    %13 = vsyncpa %s12, 0
    %14 = vsyncpa [#allocation5], 0
    %s15 = scalar_lea.sflag [#allocation5], 1
    %16 = vsyncpa %s15, 0
    loop: start=0, step=1, limit=4
    $region2: #{tpu_custom_call.1} parent=1 // loop_pre_header
      _
    $region3: #{tpu_custom_call.1} parent=1 // loop_header
      %s18 = sphi 0, %s22
      %p19 = scmp.ge.s32.totalorder %s18, 4
      %s25 = sphi 0, %s37
      %s26 = sphi 0, %s33
      %s27 = sphi 0, %s25
      %s28 = sphi 0, %s26
      %s29 = sphi 0, %s27
      %s30 = sphi 0, %s28
      %s42 = sphi 0, %s44
      %s45 = sphi 0, %s42
      %s46 = sphi 0, %s45
      %s62 = sphi 0, %s46
      %s66 = sphi 0, %s66
      %s68 = sphi 0, %s66
      %s69 = sphi 0, %s68
      %s83 = sphi 0, %s69
      %s87 = sphi 0, %s87
      %s89 = sphi 0, %s87
      %s90 = sphi 0, %s89
      %s104 = sphi 0, %s90
      %s112 = sphi 0, %s114
      %s115 = sphi 0, %s112
      %s116 = sphi 0, %s115
      %s132 = sphi 0, %s116
      %s140 = sphi 0, %s142
      %s143 = sphi 0, %s140
      %s144 = sphi 0, %s143
      %s160 = sphi 0, %s144
      %s168 = sphi 0, %s170
      %s171 = sphi 0, %s168
      %s172 = sphi 0, %s171
      %s188 = sphi 0, %s172
    $region4: #{tpu_custom_call.1} parent=1 // loop_header_branch
      %21 = sbr.rel (%p19) target = $region8
    $region5: #{tpu_custom_call.1} parent=1 // loop_body
      %s23 = ssub.s32 %s18, 1
      %s24 = ssub.s32 %s18, 2
      %s31 = sadd.s32 1, %s26
      %p32 = scmp.ge.s32.totalorder %s31, 1
      %s33 = scalar_select %p32, 0, %s31
      %s34 = sadd.s32 1, %s25
      %s35 = scalar_select %p32, %s34, %s25
      %p36 = scmp.ge.s32.totalorder %s35, 2
      %s37 = scalar_select %p36, 0, %s35
      %s38 = ssub.s32 %s25, %s37
      %s39 = ssub.s32 %s26, %s33
      %s40 = sor.u32 %s38, %s39
      %p41 = scmp.eq.s32.totalorder %s40, 0
      %s43 = sadd.s32 %s42, 1
      %s44 = scalar_select %p41, %s42, %s43
      %p47 = pneg %p41
      %p48 = scmp.eq.s32.totalorder %s18, 1
      %p49 = por %p47, %p48
      %p50 = scmp.ne.s32.totalorder %s42, %s45
      %p51 = scmp.eq.s32.totalorder %s18, 0
      %p52 = por %p50, %p51
      %p53 = scmp.ne.s32.totalorder %s42, %s45
      %p54 = scmp.eq.s32.totalorder %s23, 1
      %p55 = por %p53, %p54
      %p56 = scmp.ne.s32.totalorder %s45, %s46
      %p57 = scmp.eq.s32.totalorder %s23, 0
      %p58 = por %p56, %p57
      %p59 = scmp.ne.s32.totalorder %s45, %s46
      %p60 = scmp.eq.s32.totalorder %s24, 1
      %p61 = por %p59, %p60
      %p63 = scmp.ne.s32.totalorder %s46, %s62
      %p64 = scmp.eq.s32.totalorder %s24, 0
      %p65 = por %p63, %p64
      %s67 = sadd.s32 %s66, 1
      %p70 = scmp.eq.s32.totalorder %s18, 1
      %p71 = scmp.ne.s32.totalorder %s66, %s68
      %p72 = scmp.eq.s32.totalorder %s18, 0
      %p73 = por %p71, %p72
      %p74 = scmp.ne.s32.totalorder %s66, %s68
      %p75 = scmp.eq.s32.totalorder %s23, 1
      %p76 = por %p74, %p75
      %p77 = scmp.ne.s32.totalorder %s68, %s69
      %p78 = scmp.eq.s32.totalorder %s23, 0
      %p79 = por %p77, %p78
      %p80 = scmp.ne.s32.totalorder %s68, %s69
      %p81 = scmp.eq.s32.totalorder %s24, 1
      %p82 = por %p80, %p81
      %p84 = scmp.ne.s32.totalorder %s69, %s83
      %p85 = scmp.eq.s32.totalorder %s24, 0
      %p86 = por %p84, %p85
      %s88 = sadd.s32 %s87, 1
      %p91 = scmp.eq.s32.totalorder %s18, 1
      %p92 = scmp.ne.s32.totalorder %s87, %s89
      %p93 = scmp.eq.s32.totalorder %s18, 0
      %p94 = por %p92, %p93
      %p95 = scmp.ne.s32.totalorder %s87, %s89
      %p96 = scmp.eq.s32.totalorder %s23, 1
      %p97 = por %p95, %p96
      %p98 = scmp.ne.s32.totalorder %s89, %s90
      %p99 = scmp.eq.s32.totalorder %s23, 0
      %p100 = por %p98, %p99
      %p101 = scmp.ne.s32.totalorder %s89, %s90
      %p102 = scmp.eq.s32.totalorder %s24, 1
      %p103 = por %p101, %p102
      %p105 = scmp.ne.s32.totalorder %s90, %s104
      %p106 = scmp.eq.s32.totalorder %s24, 0
      %p107 = por %p105, %p106
      %s108 = ssub.s32 %s25, %s37
      %s109 = ssub.s32 %s26, %s33
      %s110 = sor.u32 %s108, %s109
      %p111 = scmp.eq.s32.totalorder %s110, 0
      %s113 = sadd.s32 %s112, 1
      %s114 = scalar_select %p111, %s112, %s113
      %p117 = pneg %p111
      %p118 = scmp.eq.s32.totalorder %s18, 1
      %p119 = por %p117, %p118
      %p120 = scmp.ne.s32.totalorder %s112, %s115
      %p121 = scmp.eq.s32.totalorder %s18, 0
      %p122 = por %p120, %p121
      %p123 = scmp.ne.s32.totalorder %s112, %s115
      %p124 = scmp.eq.s32.totalorder %s23, 1
      %p125 = por %p123, %p124
      %p126 = scmp.ne.s32.totalorder %s115, %s116
      %p127 = scmp.eq.s32.totalorder %s23, 0
      %p128 = por %p126, %p127
      %p129 = scmp.ne.s32.totalorder %s115, %s116
      %p130 = scmp.eq.s32.totalorder %s24, 1
      %p131 = por %p129, %p130
      %p133 = scmp.ne.s32.totalorder %s116, %s132
      %p134 = scmp.eq.s32.totalorder %s24, 0
      %p135 = por %p133, %p134
      %s136 = ssub.s32 %s25, %s37
      %s137 = ssub.s32 %s26, %s33
      %s138 = sor.u32 %s136, %s137
      %p139 = scmp.eq.s32.totalorder %s138, 0
      %s141 = sadd.s32 %s140, 1
      %s142 = scalar_select %p139, %s140, %s141
      %p145 = pneg %p139
      %p146 = scmp.eq.s32.totalorder %s18, 1
      %p147 = por %p145, %p146
      %p148 = scmp.ne.s32.totalorder %s140, %s143
      %p149 = scmp.eq.s32.totalorder %s18, 0
      %p150 = por %p148, %p149
      %p151 = scmp.ne.s32.totalorder %s140, %s143
      %p152 = scmp.eq.s32.totalorder %s23, 1
      %p153 = por %p151, %p152
      %p154 = scmp.ne.s32.totalorder %s143, %s144
      %p155 = scmp.eq.s32.totalorder %s23, 0
      %p156 = por %p154, %p155
      %p157 = scmp.ne.s32.totalorder %s143, %s144
      %p158 = scmp.eq.s32.totalorder %s24, 1
      %p159 = por %p157, %p158
      %p161 = scmp.ne.s32.totalorder %s144, %s160
      %p162 = scmp.eq.s32.totalorder %s24, 0
      %p163 = por %p161, %p162
      %s164 = ssub.s32 %s25, %s37
      %s165 = ssub.s32 %s26, %s33
      %s166 = sor.u32 %s164, %s165
      %p167 = scmp.eq.s32.totalorder %s166, 0
      %s169 = sadd.s32 %s168, 1
      %s170 = scalar_select %p167, %s168, %s169
      %p173 = pneg %p167
      %p174 = scmp.eq.s32.totalorder %s18, 1
      %p175 = por %p173, %p174
      %p176 = scmp.ne.s32.totalorder %s168, %s171
      %p177 = scmp.eq.s32.totalorder %s18, 0
      %p178 = por %p176, %p177
      %p179 = scmp.ne.s32.totalorder %s168, %s171
      %p180 = scmp.eq.s32.totalorder %s23, 1
      %p181 = por %p179, %p180
      %p182 = scmp.ne.s32.totalorder %s171, %s172
      %p183 = scmp.eq.s32.totalorder %s23, 0
      %p184 = por %p182, %p183
      %p185 = scmp.ne.s32.totalorder %s171, %s172
      %p186 = scmp.eq.s32.totalorder %s24, 1
      %p187 = por %p185, %p186
      %p189 = scmp.ne.s32.totalorder %s172, %s188
      %p190 = scmp.eq.s32.totalorder %s24, 0
      %p191 = por %p189, %p190
      %p192 = scmp.le.s32.totalorder 1, %s18
      %p193 = scmp.lt.s32.totalorder %s18, 3
      %p194 = pnand %p192, %p193
      %p195 = pneg %p194
      // Predicated region
      $region9: #{tpu_custom_call.1} parent=5 // pred_check
        _
      $region10: #{tpu_custom_call.1} parent=5 // pred_check_branch
        %197 = sbr.rel (%p194) target = $region12
      $region11: #{tpu_custom_call.1} parent=5 // pred_region
        %s198 = ssub.s32 %s18, 1
        // Predicated region
        $region13: #{tpu_custom_call.1} parent=11 // pred_check
          %p199 = pneg %p79
        $region14: #{tpu_custom_call.1} parent=11 // pred_check_branch
          %201 = sbr.rel (%p199) target = $region16
        $region15: #{tpu_custom_call.1} parent=11 // pred_region
          _
        $region16: #{tpu_custom_call.1} parent=11 // pred_fallthru
          _
        // Predicated region
        $region17: #{tpu_custom_call.1} parent=11 // pred_check
          %p202 = pneg %p100
        $region18: #{tpu_custom_call.1} parent=11 // pred_check_branch
          %204 = sbr.rel (%p202) target = $region20
        $region19: #{tpu_custom_call.1} parent=11 // pred_region
          _
        $region20: #{tpu_custom_call.1} parent=11 // pred_fallthru
          _
      $region12: #{tpu_custom_call.1} parent=5 // pred_fallthru
        _
      %p205 = scmp.lt.s32.totalorder %s18, 2
      // Predicated region
      $region21: #{tpu_custom_call.1} parent=5 // pred_check
        %p206 = pneg %p205
      $region22: #{tpu_custom_call.1} parent=5 // pred_check_branch
        %208 = sbr.rel (%p206) target = $region24
      $region23: #{tpu_custom_call.1} parent=5 // pred_region
        // Predicated region
        $region25: #{tpu_custom_call.1} parent=23 // pred_check
          %p209 = pneg %p52
        $region26: #{tpu_custom_call.1} parent=23 // pred_check_branch
          %211 = sbr.rel (%p209) target = $region28
        $region27: #{tpu_custom_call.1} parent=23 // pred_region
          %p212 = scmp.lt.s32.totalorder %s25, 1
          %s213 = scalar_select %p212, %s25, 1
          %p214 = scmp.lt.s32.totalorder %s26, 0
          %s215 = scalar_select %p214, %s26, 0
          %s216 = sadd.s32 %s215, %s213
          %s217 = smul.addr %s216, 8
          %s218 = scalar_lea.vmem %s0, %s217
        $region28: #{tpu_custom_call.1} parent=23 // pred_fallthru
          _
      $region24: #{tpu_custom_call.1} parent=5 // pred_fallthru
        _
      %p219 = scmp.le.s32.totalorder 1, %s18
      %p220 = scmp.lt.s32.totalorder %s18, 3
      %p221 = pnand %p219, %p220
      %p222 = pneg %p221
      // Predicated region
      $region29: #{tpu_custom_call.1} parent=5 // pred_check
        _
      $region30: #{tpu_custom_call.1} parent=5 // pred_check_branch
        %224 = sbr.rel (%p221) target = $region32
      $region31: #{tpu_custom_call.1} parent=5 // pred_region
        %s225 = ssub.s32 %s18, 1
        %p226 = scmp.lt.s32.totalorder %s27, 1
        %s227 = scalar_select %p226, %s27, 1
        %p228 = scmp.lt.s32.totalorder %s28, 0
        %s229 = scalar_select %p228, %s28, 0
        %s230 = sadd.s32 %s229, %s227
        %s231 = smul.addr %s230, 8
        %s232 = scalar_lea.vmem %s0, %s231
        %p233 = pneg %p58
        %p234 = pneg %p55
        %p235 = pneg %p79
        %p236 = pneg %p76
        %p237 = pneg %p100
        %p238 = pneg %p97
        %p239 = pneg %p128
        %p240 = pneg %p125
        %s241 = sand.u32 %s115, 1
        %s242 = scalar_lea.sflag [#allocation3], %s241
        %s243 = sand.u32 %s115, 1
        %s244 = smul.addr %s243, 32
        %s245 = scalar_lea.vmem [#allocation2], %s244
        %p246 = pneg %p156
        %p247 = pneg %p153
        %s248 = sand.u32 %s23, 1
        %s249 = scalar_lea.sflag [#allocation5], %s248
        %s250 = sand.u32 %s143, 1
        %s251 = smul.addr %s250, 32
        %s252 = scalar_lea.vmem [#allocation4], %s251
        %p253 = pneg %p184
        %p254 = pneg %p181
        %s255 = sand.u32 %s23, 1
        %s256 = scalar_lea.sflag [#allocation5], %s255
        %s257 = sand.u32 %s171, 1
        %s258 = smul.addr %s257, 32
        %s259 = scalar_lea.vmem [#allocation6], %s258
        %p260 = scmp.lt.s32.totalorder %s27, 1
        %s261 = scalar_select %p260, %s27, 1
        %p262 = scmp.lt.s32.totalorder %s28, 0
        %s263 = scalar_select %p262, %s28, 0
        %s264 = sadd.s32 %s263, %s261
        %s265 = smul.addr %s264, 8
        %s266 = scalar_lea.vmem %s0, %s265
        %v267 = vld [vmem:[%s266] sm:$0xff]
        %v268 = vld [vmem:[%s1] sm:$0xff]
        %v269 = vld [vmem:[%s1 + $0x8] sm:$0xff]
        %v270 = vld [vmem:[%s1 + $0x10] sm:$0xff]
        %v271 = vld [vmem:[%s1 + $0x18] sm:$0xff]
        %v272 = vld [vmem:[%s2] sm:$0x1]
        %v274 = vperm.slane %v272, 0
        %vm276 = vcmask 261120
        %v278 = vsel %vm276, %v267, 0
        %280 = vmatpush.msra.mxu0 0.0
        %281 = vmatpush.msra.mxu0 0.0
        %282 = vmatpush.msra.mxu0 0.0
        %283 = vmatpush.msra.mxu0 0.0
        %284 = vmatpush.msra.mxu0 0.0
        %285 = vmatpush.msra.mxu0 0.0
        %286 = vmatpush.msra.mxu0 0.0
        %287 = vmatpush.msra.mxu0 0.0
        %288 = vmatpush.msra.mxu0 0.0
        %289 = vmatpush.msra.mxu0 0.0
        %290 = vmatpush.msra.mxu0 0.0
        %291 = vmatpush.msra.mxu0 0.0
        %292 = vmatpush.msra.mxu0 %v271
        %293 = vmatpush.msra.mxu0 %v270
        %294 = vmatpush.msra.mxu0 %v269
        %295 = vmatpush.msra.mxu0 %v268
        %296 = vmatmul.f32.gmra.mxu0 %v278
        %v297 = vpop.f32.mrf.mxu0
        %v298 = vadd.f32 %v274, %v297
        %299 = vdwg.mxu0
        %vm300 = vcmask 64512
        %301 = vst.msk [vmem:[%s245] sm:$0xff] %vm300, %v298
        %303 = vrot.lane.b32.xlu0 %v298, 120
        %v304 = vpop.permute.xlu0 %303
        %306 = vst.msk [vmem:[%s252] sm:$0xff] %vm300, %v304
        %307 = vrot.lane.b32.xlu0 %v298, 112
        %v308 = vpop.permute.xlu0 %307
        %310 = vst.msk [vmem:[%s259] sm:$0xff] %vm300, %v308
        %s311 = scalar_lea.vmem %s1, 32
        %v312 = vld [vmem:[%s311] sm:$0xff]
        %v313 = vld [vmem:[%s311 + $0x8] sm:$0xff]
        %v314 = vld [vmem:[%s311 + $0x10] sm:$0xff]
        %v315 = vld [vmem:[%s311 + $0x18] sm:$0xff]
        %s316 = scalar_lea.vmem %s2, 1
        %v317 = vld [vmem:[%s316] sm:$0x1]
        %v319 = vperm.slane %v317, 0
        %321 = vmatpush.msra.mxu0 0.0
        %322 = vmatpush.msra.mxu0 0.0
        %323 = vmatpush.msra.mxu0 0.0
        %324 = vmatpush.msra.mxu0 0.0
        %325 = vmatpush.msra.mxu0 0.0
        %326 = vmatpush.msra.mxu0 0.0
        %327 = vmatpush.msra.mxu0 0.0
        %328 = vmatpush.msra.mxu0 0.0
        %329 = vmatpush.msra.mxu0 0.0
        %330 = vmatpush.msra.mxu0 0.0
        %331 = vmatpush.msra.mxu0 0.0
        %332 = vmatpush.msra.mxu0 0.0
        %333 = vmatpush.msra.mxu0 %v315
        %334 = vmatpush.msra.mxu0 %v314
        %335 = vmatpush.msra.mxu0 %v313
        %336 = vmatpush.msra.mxu0 %v312
        %337 = vmatmul.f32.gmra.mxu0 %v278
        %v338 = vpop.f32.mrf.mxu0
        %v339 = vadd.f32 %v319, %v338
        %340 = vdwg.mxu0
        %s341 = scalar_lea.vmem %s245, 8 [#allocation2]
        %342 = vst.msk [vmem:[%s341] sm:$0xff] %vm300, %v339
        %344 = vrot.lane.b32.xlu0 %v339, 120
        %v345 = vpop.permute.xlu0 %344
        %s347 = scalar_lea.vmem %s252, 8 [#allocation4]
        %348 = vst.msk [vmem:[%s347] sm:$0xff] %vm300, %v345
        %349 = vrot.lane.b32.xlu0 %v339, 112
        %v350 = vpop.permute.xlu0 %349
        %s352 = scalar_lea.vmem %s259, 8 [#allocation6]
        %353 = vst.msk [vmem:[%s352] sm:$0xff] %vm300, %v350
        %s354 = scalar_lea.vmem %s1, 64
        %v355 = vld [vmem:[%s354] sm:$0xff]
        %v356 = vld [vmem:[%s354 + $0x8] sm:$0xff]
        %v357 = vld [vmem:[%s354 + $0x10] sm:$0xff]
        %v358 = vld [vmem:[%s354 + $0x18] sm:$0xff]
        %s359 = scalar_lea.vmem %s2, 2
        %v360 = vld [vmem:[%s359] sm:$0x1]
        %v362 = vperm.slane %v360, 0
        %364 = vmatpush.msra.mxu0 0.0
        %365 = vmatpush.msra.mxu0 0.0
        %366 = vmatpush.msra.mxu0 0.0
        %367 = vmatpush.msra.mxu0 0.0
        %368 = vmatpush.msra.mxu0 0.0
        %369 = vmatpush.msra.mxu0 0.0
        %370 = vmatpush.msra.mxu0 0.0
        %371 = vmatpush.msra.mxu0 0.0
        %372 = vmatpush.msra.mxu0 0.0
        %373 = vmatpush.msra.mxu0 0.0
        %374 = vmatpush.msra.mxu0 0.0
        %375 = vmatpush.msra.mxu0 0.0
        %376 = vmatpush.msra.mxu0 %v358
        %377 = vmatpush.msra.mxu0 %v357
        %378 = vmatpush.msra.mxu0 %v356
        %379 = vmatpush.msra.mxu0 %v355
        %380 = vmatmul.f32.gmra.mxu0 %v278
        %v381 = vpop.f32.mrf.mxu0
        %v382 = vadd.f32 %v362, %v381
        %383 = vdwg.mxu0
        %s384 = scalar_lea.vmem %s245, 16 [#allocation2]
        %385 = vst.msk [vmem:[%s384] sm:$0xff] %vm300, %v382
        %387 = vrot.lane.b32.xlu0 %v382, 120
        %v388 = vpop.permute.xlu0 %387
        %s390 = scalar_lea.vmem %s252, 16 [#allocation4]
        %391 = vst.msk [vmem:[%s390] sm:$0xff] %vm300, %v388
        %392 = vrot.lane.b32.xlu0 %v382, 112
        %v393 = vpop.permute.xlu0 %392
        %s395 = scalar_lea.vmem %s259, 16 [#allocation6]
        %396 = vst.msk [vmem:[%s395] sm:$0xff] %vm300, %v393
        %s397 = scalar_lea.vmem %s1, 96
        %v398 = vld [vmem:[%s397] sm:$0xff]
        %v399 = vld [vmem:[%s397 + $0x8] sm:$0xff]
        %v400 = vld [vmem:[%s397 + $0x10] sm:$0xff]
        %v401 = vld [vmem:[%s397 + $0x18] sm:$0xff]
        %s402 = scalar_lea.vmem %s2, 3
        %v403 = vld [vmem:[%s402] sm:$0x1]
        %v405 = vperm.slane %v403, 0
        %407 = vmatpush.msra.mxu0 0.0
        %408 = vmatpush.msra.mxu0 0.0
        %409 = vmatpush.msra.mxu0 0.0
        %410 = vmatpush.msra.mxu0 0.0
        %411 = vmatpush.msra.mxu0 0.0
        %412 = vmatpush.msra.mxu0 0.0
        %413 = vmatpush.msra.mxu0 0.0
        %414 = vmatpush.msra.mxu0 0.0
        %415 = vmatpush.msra.mxu0 0.0
        %416 = vmatpush.msra.mxu0 0.0
        %417 = vmatpush.msra.mxu0 0.0
        %418 = vmatpush.msra.mxu0 0.0
        %419 = vmatpush.msra.mxu0 %v401
        %420 = vmatpush.msra.mxu0 %v400
        %421 = vmatpush.msra.mxu0 %v399
        %422 = vmatpush.msra.mxu0 %v398
        %423 = vmatmul.f32.gmra.mxu0 %v278
        %v424 = vpop.f32.mrf.mxu0
        %v425 = vadd.f32 %v405, %v424
        %426 = vdwg.mxu0
        %s427 = scalar_lea.vmem %s245, 24 [#allocation2]
        %428 = vst.msk [vmem:[%s427] sm:$0xff] %vm300, %v425
        %430 = vrot.lane.b32.xlu0 %v425, 120
        %v431 = vpop.permute.xlu0 %430
        %s433 = scalar_lea.vmem %s252, 24 [#allocation4]
        %434 = vst.msk [vmem:[%s433] sm:$0xff] %vm300, %v431
        %435 = vrot.lane.b32.xlu0 %v425, 112
        %v436 = vpop.permute.xlu0 %435
        %s438 = scalar_lea.vmem %s259, 24 [#allocation6]
        %439 = vst.msk [vmem:[%s438] sm:$0xff] %vm300, %v436
        %s440 = sand.u32 %s115, 1
        %s441 = scalar_lea.sflag [#allocation3], %s440
        %s442 = sand.u32 %s115, 1
        %s443 = smul.addr %s442, 32
        %s444 = scalar_lea.vmem [#allocation2], %s443
        %s445 = sand.u32 %s23, 1
        %s446 = scalar_lea.sflag [#allocation5], %s445
        %s447 = sand.u32 %s143, 1
        %s448 = smul.addr %s447, 32
        %s449 = scalar_lea.vmem [#allocation4], %s448
        %s450 = sand.u32 %s23, 1
        %s451 = scalar_lea.sflag [#allocation5], %s450
        %s452 = sand.u32 %s171, 1
        %s453 = smul.addr %s452, 32
        %s454 = scalar_lea.vmem [#allocation6], %s453
        // Predicated region
        $region33: #{tpu_custom_call.1} parent=31 // pred_check
          %p455 = pneg %p125
        $region34: #{tpu_custom_call.1} parent=31 // pred_check_branch
          %457 = sbr.rel (%p455) target = $region36
        $region35: #{tpu_custom_call.1} parent=31 // pred_region
          %459 = vsyncadd %s441, 0
          %s460 = smul.addr %s27, 4
          %s461 = sadd.s32 %s28, %s460
          %s462 = smul.addr %s461, 8
          %s463 = scalar_lea.hbm %s3, %s462
          %s464 = sshll.u32 %s444, 4
          %s465 = int_to_ptr.vmem [resolvable:$true] %s464
          %s466 = sshll.u32 %s463, 4
          %s467 = int_to_ptr.hbm [resolvable:$true] %s466
          %472 = dma.vmem_to_hbm [thread:$0]  %s465, 512, %s467, %s441, 128, 128, 8
        $region36: #{tpu_custom_call.1} parent=31 // pred_fallthru
          _
        // Predicated region
        $region37: #{tpu_custom_call.1} parent=31 // pred_check
          %p473 = pneg %p153
        $region38: #{tpu_custom_call.1} parent=31 // pred_check_branch
          %475 = sbr.rel (%p473) target = $region40
        $region39: #{tpu_custom_call.1} parent=31 // pred_region
          %477 = vsyncadd %s446, 0
          %s478 = smul.addr %s27, 4
          %s479 = sadd.s32 %s28, %s478
          %s480 = smul.addr %s479, 8
          %s481 = scalar_lea.hbm %s4, %s480
          %s482 = sshll.u32 %s449, 4
          %s483 = int_to_ptr.vmem [resolvable:$true] %s482
          %s484 = sshll.u32 %s481, 4
          %s485 = int_to_ptr.hbm [resolvable:$true] %s484
          %490 = dma.vmem_to_hbm [thread:$0]  %s483, 512, %s485, %s446, 128, 128, 8
        $region40: #{tpu_custom_call.1} parent=31 // pred_fallthru
          _
        // Predicated region
        $region41: #{tpu_custom_call.1} parent=31 // pred_check
          %p491 = pneg %p181
        $region42: #{tpu_custom_call.1} parent=31 // pred_check_branch
          %493 = sbr.rel (%p491) target = $region44
        $region43: #{tpu_custom_call.1} parent=31 // pred_region
          %495 = vsyncadd %s451, 0
          %s496 = smul.addr %s27, 4
          %s497 = sadd.s32 %s28, %s496
          %s498 = smul.addr %s497, 8
          %s499 = scalar_lea.hbm %s5, %s498
          %s500 = sshll.u32 %s454, 4
          %s501 = int_to_ptr.vmem [resolvable:$true] %s500
          %s502 = sshll.u32 %s499, 4
          %s503 = int_to_ptr.hbm [resolvable:$true] %s502
          %508 = dma.vmem_to_hbm [thread:$0]  %s501, 512, %s503, %s451, 128, 128, 8
        $region44: #{tpu_custom_call.1} parent=31 // pred_fallthru
          _
      $region32: #{tpu_custom_call.1} parent=5 // pred_fallthru
        _
      %p509 = scmp.le.s32.totalorder 2, %s18
      // Predicated region
      $region45: #{tpu_custom_call.1} parent=5 // pred_check
        %p510 = pneg %p509
      $region46: #{tpu_custom_call.1} parent=5 // pred_check_branch
        %512 = sbr.rel (%p510) target = $region48
      $region47: #{tpu_custom_call.1} parent=5 // pred_region
        %s513 = ssub.s32 %s18, 2
        // Predicated region
        $region49: #{tpu_custom_call.1} parent=47 // pred_check
          %p514 = pneg %p131
        $region50: #{tpu_custom_call.1} parent=47 // pred_check_branch
          %516 = sbr.rel (%p514) target = $region52
        $region51: #{tpu_custom_call.1} parent=47 // pred_region
          %s517 = sand.u32 %s116, 1
          %s518 = scalar_lea.sflag [#allocation3], %s517
          %s519 = sand.u32 %s116, 1
          %s520 = smul.addr %s519, 32
          %s521 = scalar_lea.vmem [#allocation2], %s520
          %523 = dma.done %s518, 512
        $region52: #{tpu_custom_call.1} parent=47 // pred_fallthru
          _
        // Predicated region
        $region53: #{tpu_custom_call.1} parent=47 // pred_check
          %p524 = pneg %p159
        $region54: #{tpu_custom_call.1} parent=47 // pred_check_branch
          %526 = sbr.rel (%p524) target = $region56
        $region55: #{tpu_custom_call.1} parent=47 // pred_region
          %s527 = sand.u32 %s24, 1
          %s528 = scalar_lea.sflag [#allocation5], %s527
          %s529 = sand.u32 %s144, 1
          %s530 = smul.addr %s529, 32
          %s531 = scalar_lea.vmem [#allocation4], %s530
          %533 = dma.done %s528, 512
        $region56: #{tpu_custom_call.1} parent=47 // pred_fallthru
          _
        // Predicated region
        $region57: #{tpu_custom_call.1} parent=47 // pred_check
          %p534 = pneg %p187
        $region58: #{tpu_custom_call.1} parent=47 // pred_check_branch
          %536 = sbr.rel (%p534) target = $region60
        $region59: #{tpu_custom_call.1} parent=47 // pred_region
          %s537 = sand.u32 %s24, 1
          %s538 = scalar_lea.sflag [#allocation5], %s537
          %s539 = sand.u32 %s172, 1
          %s540 = smul.addr %s539, 32
          %s541 = scalar_lea.vmem [#allocation6], %s540
          %543 = dma.done %s538, 512
        $region60: #{tpu_custom_call.1} parent=47 // pred_fallthru
          _
      $region48: #{tpu_custom_call.1} parent=5 // pred_fallthru
        _
    $region6: #{tpu_custom_call.1} parent=1 // loop_footer
      %s22 = sadd.s32 1, %s18
    $region7: #{tpu_custom_call.1} parent=1 // loop_footer_branch
      %17 = sbr.rel target = $region3
    $region8: #{tpu_custom_call.1} parent=1 // loop_exit
      _
    %544 = vsyncpa [#allocation3], 1
    %s545 = scalar_lea.sflag [#allocation3], 1
    %546 = vsyncpa %s545, 1
    %547 = vsyncpa [#allocation5], 1
    %s548 = scalar_lea.sflag [#allocation5], 1
    %549 = vsyncpa %s548, 1

</llo_original>
